<compile_context>
chip_gen: v6e
topology: v6e:2x2x1
jax: 0.10.0
libtpu: 0.0.40
codegen_flags: <defaults>
</compile_context>

<pallas_src>
import jax
import jax.numpy as jnp
from jax.experimental import pallas as pl
from jax.experimental.pallas import tpu as pltpu

# --- model hyper-parameters (kwargs of cGenerator) ---------------------------
LATENT = 32          # kwargs['latent']  (in_feat defaults to latent)
IN_FEAT = LATENT
OUT_FEAT = 2         # kwargs['out_feat']
COND_DIM = 10        # kwargs['cond_dim']
N_HIDDEN = 7         # seven (Linear, LeakyReLU) blocks
LEAKY_SLOPE = 0.01   # torch.nn.LeakyReLU default

# --- kernel-side padded dims (zero-filled; layout alignment only) ------------
COND_PAD = 16        # bf16 sublane-packing multiple for the one-hot matmul
OUT_PAD = 8          # f32 sublane multiple for the output tile

_LANE = 128          # lane width: batch-tile granularity
_TB_MAX = 2048       # max batch tile; per-tile VMEM stays <3 MiB on every gen


def _num_tensorcores_per_chip():
    """TensorCores sharing one Pallas 'parallel' grid axis (megacore / v7x)."""
    try:
        kind = jax.devices()[0].device_kind.lower()
    except Exception:
        return 1
    if any(tag in kind for tag in ("v7", "7x", "v4", "v5p")):
        return 2
    return 1


def _batch_tiling(b):
    """Lane-wide batch tile + grid length, generation-aware (per perf review).

    Single-TC chips: sequential grid -> fewest large tiles, no padding.
    2-TC chips: even number of 'parallel' steps so both cores stay busy, but a
    batch that fits in one 128-lane tile is never split (that only adds work).
    """
    if b <= _LANE:
        return _LANE, 1
    if _num_tensorcores_per_chip() >= 2:
        steps = 2 * pl.cdiv(pl.cdiv(b, _TB_MAX), 2)
    else:
        steps = pl.cdiv(b, _TB_MAX)
    tb = pl.cdiv(pl.cdiv(b, steps), _LANE) * _LANE
    return tb, pl.cdiv(b, tb)


def _mlp_kernel(cid_ref, z_ref, wz_ref, wc_ref, wh_ref, bh_ref, wo_ref, bo_ref,
                o_ref):
    """Full cGenerator MLP chain on one (feature, TB) tile; batch on lanes."""
    tb = z_ref.shape[1]

    # Fused one_hot(conds): (COND_PAD, TB) mask from the int32 id row. The f32
    # select + cast (vs a bool->bf16 convert) is kept for lowering robustness;
    # it is <1% of the tile's work.
    ids = cid_ref[...]                                               # (1, TB)
    cls = jax.lax.broadcasted_iota(jnp.int32, (COND_PAD, tb), 0)     # (COND_PAD, TB)
    onehot = jnp.where(cls == ids, 1.0, 0.0).astype(jnp.bfloat16)

    # Expansion Linear: h^T = Wz^T z^T + (Wc^T + b_exp) onehot^T   (f32 accum)
    # b_exp is pre-folded into wc_ref, so no separate bias add is needed.
    h = jnp.dot(wz_ref[...], z_ref[...], preferred_element_type=jnp.float32)
    h = h + jnp.dot(wc_ref[...], onehot, preferred_element_type=jnp.float32)

    # 7 hidden blocks: Linear + LeakyReLU(0.01); batch stays on lanes.
    def body(k, hc):
        hk = jnp.dot(wh_ref[k], hc.astype(jnp.bfloat16),
                     preferred_element_type=jnp.float32) + bh_ref[k]
        return jnp.where(hk > 0, hk, LEAKY_SLOPE * hk)

    h = jax.lax.fori_loop(0, N_HIDDEN, body, h, unroll=True)

    # Output Linear + ELU(alpha=1); lane-dense (OUT_PAD, TB) store.
    y = jnp.dot(wo_ref[...], h.astype(jnp.bfloat16),
                preferred_element_type=jnp.float32) + bo_ref[...]
    # Cancellation-safe expm1 for the negative branch (matches torch ELU):
    # 3rd-order Taylor for |y| < 1e-2, exp(y) - 1 otherwise.
    y_small = y * (1.0 + 0.5 * y * (1.0 + y * (1.0 / 3.0)))
    elu_neg = jnp.where(jnp.abs(y) < 1e-2, y_small, jnp.exp(y) - 1.0)
    o_ref[...] = jnp.where(y > 0.0, y, elu_neg).astype(o_ref.dtype)


def init_params(key):
    """PyTorch-Linear-style uniform init; f32 'math' parameters (x @ W + b)."""
    in_dim = IN_FEAT + COND_DIM
    ks = jax.random.split(key, 6)

    def uni(k, shape, fan_in):
        bound = 1.0 / jnp.sqrt(jnp.float32(fan_in))
        return jax.random.uniform(k, shape, jnp.float32, -bound, bound)

    return dict(
        w_exp=uni(ks[0], (in_dim, LATENT), in_dim),   # rows: [z (IN_FEAT) ; cond (COND_DIM)]
        b_exp=uni(ks[1], (LATENT,), in_dim),
        w_hid=uni(ks[2], (N_HIDDEN, LATENT, LATENT), LATENT),
        b_hid=uni(ks[3], (N_HIDDEN, LATENT), LATENT),
        w_out=uni(ks[4], (LATENT, OUT_FEAT), LATENT),
        b_out=uni(ks[5], (OUT_FEAT,), LATENT),
    )


def pack_params(p):
    """Kernel-layout params: transposed, bf16 matmul operands, f32 biases.

    The expansion bias is folded into the (transposed, padded) one-hot weight:
    each one-hot column has exactly one 1, so Wc'[:, c] = Wc^T[:, c] + b_exp.
    """
    w_exp = p["w_exp"]                                                      # (42, 32) f32
    wz_t = jnp.transpose(w_exp[:IN_FEAT]).astype(jnp.bfloat16)              # (LATENT, IN_FEAT)
    wc_fold = jnp.transpose(w_exp[IN_FEAT:]) + p["b_exp"][:, None]          # (LATENT, COND_DIM) f32
    wc_t = jnp.pad(wc_fold, ((0, 0), (0, COND_PAD - COND_DIM))
                   ).astype(jnp.bfloat16)                                   # (LATENT, COND_PAD)
    wh_t = jnp.transpose(p["w_hid"], (0, 2, 1)).astype(jnp.bfloat16)        # (7, LATENT, LATENT)
    b_hid = p["b_hid"].reshape(N_HIDDEN, LATENT, 1)                         # (7, LATENT, 1) f32
    wo_t = jnp.pad(jnp.transpose(p["w_out"]).astype(jnp.bfloat16),
                   ((0, OUT_PAD - OUT_FEAT), (0, 0)))                       # (OUT_PAD, LATENT)
    b_out = jnp.pad(p["b_out"].reshape(OUT_FEAT, 1),
                    ((0, OUT_PAD - OUT_FEAT), (0, 0)))                      # (OUT_PAD, 1) f32
    return (wz_t, wc_t, wh_t, b_hid, wo_t, b_out)


def _forward_t(z, conds, kparams):
    """Core forward; returns the transpose-free (OUT_FEAT, B) f32 result."""
    wz_t, wc_t, wh_t, b_hid, wo_t, b_out = kparams
    B = z.shape[0]
    TB, steps = _batch_tiling(B)

    # Lane-major operands: batch on the 128-wide lane axis. No batch padding —
    # ragged edges are partial blocks whose garbage lanes never reach HBM.
    zT = jnp.transpose(z).astype(jnp.bfloat16)          # (IN_FEAT, B) bf16
    cid = conds.astype(jnp.int32).reshape(1, B)         # (1, B) int32

    yT = pl.pallas_call(
        _mlp_kernel,
        out_shape=jax.ShapeDtypeStruct((OUT_PAD, B), jnp.float32),
        grid_spec=pltpu.PrefetchScalarGridSpec(
            num_scalar_prefetch=0,
            grid=(steps,),
            in_specs=[
                pl.BlockSpec((1, TB), lambda i: (0, i)),                        # cond ids
                pl.BlockSpec((IN_FEAT, TB), lambda i: (0, i)),                  # z^T tile
                pl.BlockSpec((LATENT, IN_FEAT), lambda i: (0, 0)),              # Wz^T
                pl.BlockSpec((LATENT, COND_PAD), lambda i: (0, 0)),             # Wc^T (+ b_exp)
                pl.BlockSpec((N_HIDDEN, LATENT, LATENT), lambda i: (0, 0, 0)),  # W_hidden^T
                pl.BlockSpec((N_HIDDEN, LATENT, 1), lambda i: (0, 0, 0)),       # b_hidden
                pl.BlockSpec((OUT_PAD, LATENT), lambda i: (0, 0)),              # W_out^T
                pl.BlockSpec((OUT_PAD, 1), lambda i: (0, 0)),                   # b_out
            ],
            out_specs=pl.BlockSpec((OUT_PAD, TB), lambda i: (0, i)),
        ),
        compiler_params=pltpu.CompilerParams(
            dimension_semantics=("parallel",),
            vmem_limit_bytes=32 * 1024 * 1024,
        ),
    )(cid, zT, wz_t, wc_t, wh_t, b_hid, wo_t, b_out)

    # Slice the 2 real rows before anything else crosses HBM again.
    return yT[:OUT_FEAT]


@jax.jit
def cgenerator_forward(z, conds, kparams):
    """z: (B, IN_FEAT) f32, conds: (B,) int ids -> (B, OUT_FEAT) f32."""
    return jnp.transpose(_forward_t(z, conds, kparams))


@jax.jit
def cgenerator_forward_t(z, conds, kparams):
    """Transpose-free variant: (OUT_FEAT, B) f32, for layout-tolerant consumers."""
    return _forward_t(z, conds, kparams)


# --- references --------------------------------------------------------------
def cgenerator_reference_packed(z, conds, kp):
    """Pure-JAX mirror of the kernel's exact math (bf16 operands / f32 accum,
    folded expansion bias).  Tight-tolerance check of kernel correctness."""
    wz_t, wc_t, wh_t, b_hid, wo_t, b_out = kp
    onehot = jax.nn.one_hot(conds, COND_PAD, dtype=jnp.float32).astype(jnp.bfloat16)
    h = (jnp.dot(z.astype(jnp.bfloat16), jnp.transpose(wz_t),
                 preferred_element_type=jnp.float32)
         + jnp.dot(onehot, jnp.transpose(wc_t),
                   preferred_element_type=jnp.float32))
    for k in range(N_HIDDEN):
        h = jnp.dot(h.astype(jnp.bfloat16), jnp.transpose(wh_t[k]),
                    preferred_element_type=jnp.float32) + b_hid[k, :, 0]
        h = jnp.where(h > 0, h, LEAKY_SLOPE * h)
    y = jnp.dot(h.astype(jnp.bfloat16), jnp.transpose(wo_t),
                preferred_element_type=jnp.float32) + b_out[:, 0]
    y = y[:, :OUT_FEAT]
    return jnp.where(y > 0, y, jnp.expm1(y))


def cgenerator_reference_f32(z, conds, p):
    """Pure-f32 reference of the true PyTorch forward (semantic check)."""
    cond = jax.nn.one_hot(conds, COND_DIM, dtype=jnp.float32)
    x = jnp.concatenate([z, cond], axis=-1)
    h = x @ p["w_exp"] + p["b_exp"]
    for k in range(N_HIDDEN):
        h = h @ p["w_hid"][k] + p["b_hid"][k]
        h = jnp.where(h > 0, h, LEAKY_SLOPE * h)
    y = h @ p["w_out"] + p["b_out"]
    return jnp.where(y > 0, y, jnp.expm1(y))


if __name__ == "__main__":
    key = jax.random.PRNGKey(0)
    k_param, k_z, k_c = jax.random.split(key, 3)

    B = 16
    params = init_params(k_param)
    kparams = pack_params(params)
    z = jax.random.normal(k_z, (B, IN_FEAT), dtype=jnp.float32)
    conds = jax.random.randint(k_c, (B,), 0, COND_DIM, dtype=jnp.int32)

    out = jax.block_until_ready(cgenerator_forward(z, conds, kparams))
    assert out.shape == (B, OUT_FEAT)

    # Transpose-free entry point produces the same values.
    out_t = jax.block_until_ready(cgenerator_forward_t(z, conds, kparams))
    assert out_t.shape == (OUT_FEAT, B)
    assert jnp.allclose(out, jnp.transpose(out_t)), "batch-major / feature-major mismatch"

    # Tight check: kernel vs a pure-JAX mirror of the same bf16/f32-accum math
    # (catches indexing / layout / fusion bugs).
    ref_packed = cgenerator_reference_packed(z, conds, kparams)
    assert jnp.allclose(out, ref_packed, atol=2e-3, rtol=2e-3), \
        "mismatch vs packed (bf16) reference"

    # Semantic check: kernel vs the true f32 PyTorch-style forward; tolerance
    # covers bf16 operand rounding through the 9-layer chain.
    ref_f32 = cgenerator_reference_f32(z, conds, params)
    assert jnp.allclose(out, ref_f32, atol=2e-2, rtol=2e-2), \
        "mismatch vs f32 reference"

    print("KERNEL_OK")
</pallas_src>

<mosaic_0001>
module attributes {stable_mosaic.version = 11 : i64} {
  func.func @_mlp_kernel(%arg0: i32, %arg1: memref<1x128xi32, #tpu.memory_space<vmem>>, %arg2: memref<32x128xbf16, #tpu.memory_space<vmem>>, %arg3: memref<32x32xbf16, #tpu.memory_space<vmem>>, %arg4: memref<32x16xbf16, #tpu.memory_space<vmem>>, %arg5: memref<7x32x32xbf16, #tpu.memory_space<vmem>>, %arg6: memref<7x32x1xf32, #tpu.memory_space<vmem>>, %arg7: memref<8x32xbf16, #tpu.memory_space<vmem>>, %arg8: memref<8x1xf32, #tpu.memory_space<vmem>>, %arg9: memref<8x128xf32, #tpu.memory_space<vmem>>) attributes {dimension_semantics = [#tpu.dimension_semantics<parallel>], iteration_bounds = array<i64: 1>, scalar_prefetch = 0 : i64, scratch_operands = 0 : i64, tpu.core_type = #tpu.core_type<tc>, window_params = [{transform_indices = @transform_0, window_bounds = array<i64: 1, 128>}, {transform_indices = @transform_1, window_bounds = array<i64: 32, 128>}, {pipeline_mode = #tpu.pipeline_mode<synchronous>, transform_indices = @transform_2, window_bounds = array<i64: 32, 32>}, {pipeline_mode = #tpu.pipeline_mode<synchronous>, transform_indices = @transform_3, window_bounds = array<i64: 32, 16>}, {pipeline_mode = #tpu.pipeline_mode<synchronous>, transform_indices = @transform_4, window_bounds = array<i64: 7, 32, 32>}, {pipeline_mode = #tpu.pipeline_mode<synchronous>, transform_indices = @transform_5, window_bounds = array<i64: 7, 32, 1>}, {pipeline_mode = #tpu.pipeline_mode<synchronous>, transform_indices = @transform_6, window_bounds = array<i64: 8, 32>}, {pipeline_mode = #tpu.pipeline_mode<synchronous>, transform_indices = @transform_7, window_bounds = array<i64: 8, 1>}, {transform_indices = @transform_8, window_bounds = array<i64: 8, 128>}]} {
    %c0 = arith.constant 0 : index
    %c0_0 = arith.constant 0 : index
    %0 = vector.load %arg1[%c0, %c0_0] : memref<1x128xi32, #tpu.memory_space<vmem>>, vector<1x128xi32>
    %1 = tpu.iota {dimensions = array<i32: 0>} : vector<16x128xi32>
    %2 = vector.broadcast %0 : vector<1x128xi32> to vector<16x128xi32>
    %3 = arith.cmpi eq, %1, %2 : vector<16x128xi32>
    %cst = arith.constant 1.000000e+00 : f32
    %cst_1 = arith.constant 0.000000e+00 : f32
    %4 = vector.broadcast %cst : f32 to vector<16x128xf32>
    %5 = vector.broadcast %cst_1 : f32 to vector<16x128xf32>
    %6 = arith.select %3, %4, %5 : vector<16x128xi1>, vector<16x128xf32>
    %7 = arith.truncf %6 : vector<16x128xf32> to vector<16x128xbf16>
    %c0_2 = arith.constant 0 : index
    %c0_3 = arith.constant 0 : index
    %8 = vector.load %arg3[%c0_2, %c0_3] : memref<32x32xbf16, #tpu.memory_space<vmem>>, vector<32x32xbf16>
    %c0_4 = arith.constant 0 : index
    %c0_5 = arith.constant 0 : index
    %9 = vector.load %arg2[%c0_4, %c0_5] : memref<32x128xbf16, #tpu.memory_space<vmem>>, vector<32x128xbf16>
    %cst_6 = arith.constant dense<0.000000e+00> : vector<32x128xf32>
    %10 = tpu.matmul %8, %9, %cst_6 {dimension_numbers = #tpu.dot_dimension_numbers<[1], [0], [0], [1], [0, 0, 1, 1], [], []>} : vector<32x32xbf16>, vector<32x128xbf16>, vector<32x128xf32> -> vector<32x128xf32>
    %c0_7 = arith.constant 0 : index
    %c0_8 = arith.constant 0 : index
    %11 = vector.load %arg4[%c0_7, %c0_8] : memref<32x16xbf16, #tpu.memory_space<vmem>>, vector<32x16xbf16>
    %cst_9 = arith.constant dense<0.000000e+00> : vector<32x128xf32>
    %12 = tpu.matmul %11, %7, %cst_9 {dimension_numbers = #tpu.dot_dimension_numbers<[1], [0], [0], [1], [0, 0, 1, 1], [], []>} : vector<32x16xbf16>, vector<16x128xbf16>, vector<32x128xf32> -> vector<32x128xf32>
    %13 = arith.addf %10, %12 : vector<32x128xf32>
    %c0_i32 = arith.constant 0 : i32
    %14 = arith.index_cast %c0_i32 : i32 to index
    %c0_10 = arith.constant 0 : index
    %c0_11 = arith.constant 0 : index
    %15 = vector.load %arg5[%14, %c0_10, %c0_11] : memref<7x32x32xbf16, #tpu.memory_space<vmem>>, vector<1x32x32xbf16>
    %16 = vector.shape_cast %15 : vector<1x32x32xbf16> to vector<32x32xbf16>
    %17 = arith.truncf %13 : vector<32x128xf32> to vector<32x128xbf16>
    %cst_12 = arith.constant dense<0.000000e+00> : vector<32x128xf32>
    %18 = tpu.matmul %16, %17, %cst_12 {dimension_numbers = #tpu.dot_dimension_numbers<[1], [0], [0], [1], [0, 0, 1, 1], [], []>} : vector<32x32xbf16>, vector<32x128xbf16>, vector<32x128xf32> -> vector<32x128xf32>
    %19 = arith.index_cast %c0_i32 : i32 to index
    %c0_13 = arith.constant 0 : index
    %c0_14 = arith.constant 0 : index
    %20 = vector.load %arg6[%19, %c0_13, %c0_14] : memref<7x32x1xf32, #tpu.memory_space<vmem>>, vector<1x32x1xf32>
    %21 = vector.shape_cast %20 : vector<1x32x1xf32> to vector<32x1xf32>
    %22 = vector.broadcast %21 : vector<32x1xf32> to vector<32x128xf32>
    %23 = arith.addf %18, %22 : vector<32x128xf32>
    %cst_15 = arith.constant 0.000000e+00 : f32
    %24 = vector.broadcast %cst_15 : f32 to vector<32x128xf32>
    %25 = arith.cmpf ogt, %23, %24 : vector<32x128xf32>
    %cst_16 = arith.constant 0.00999999977 : f32
    %26 = vector.broadcast %cst_16 : f32 to vector<32x128xf32>
    %27 = arith.mulf %26, %23 : vector<32x128xf32>
    %28 = arith.select %25, %23, %27 : vector<32x128xi1>, vector<32x128xf32>
    %c1_i32 = arith.constant 1 : i32
    %29 = arith.index_cast %c1_i32 : i32 to index
    %c0_17 = arith.constant 0 : index
    %c0_18 = arith.constant 0 : index
    %30 = vector.load %arg5[%29, %c0_17, %c0_18] : memref<7x32x32xbf16, #tpu.memory_space<vmem>>, vector<1x32x32xbf16>
    %31 = vector.shape_cast %30 : vector<1x32x32xbf16> to vector<32x32xbf16>
    %32 = arith.truncf %28 : vector<32x128xf32> to vector<32x128xbf16>
    %cst_19 = arith.constant dense<0.000000e+00> : vector<32x128xf32>
    %33 = tpu.matmul %31, %32, %cst_19 {dimension_numbers = #tpu.dot_dimension_numbers<[1], [0], [0], [1], [0, 0, 1, 1], [], []>} : vector<32x32xbf16>, vector<32x128xbf16>, vector<32x128xf32> -> vector<32x128xf32>
    %34 = arith.index_cast %c1_i32 : i32 to index
    %c0_20 = arith.constant 0 : index
    %c0_21 = arith.constant 0 : index
    %35 = vector.load %arg6[%34, %c0_20, %c0_21] : memref<7x32x1xf32, #tpu.memory_space<vmem>>, vector<1x32x1xf32>
    %36 = vector.shape_cast %35 : vector<1x32x1xf32> to vector<32x1xf32>
    %37 = vector.broadcast %36 : vector<32x1xf32> to vector<32x128xf32>
    %38 = arith.addf %33, %37 : vector<32x128xf32>
    %cst_22 = arith.constant 0.000000e+00 : f32
    %39 = vector.broadcast %cst_22 : f32 to vector<32x128xf32>
    %40 = arith.cmpf ogt, %38, %39 : vector<32x128xf32>
    %cst_23 = arith.constant 0.00999999977 : f32
    %41 = vector.broadcast %cst_23 : f32 to vector<32x128xf32>
    %42 = arith.mulf %41, %38 : vector<32x128xf32>
    %43 = arith.select %40, %38, %42 : vector<32x128xi1>, vector<32x128xf32>
    %c2_i32 = arith.constant 2 : i32
    %44 = arith.index_cast %c2_i32 : i32 to index
    %c0_24 = arith.constant 0 : index
    %c0_25 = arith.constant 0 : index
    %45 = vector.load %arg5[%44, %c0_24, %c0_25] : memref<7x32x32xbf16, #tpu.memory_space<vmem>>, vector<1x32x32xbf16>
    %46 = vector.shape_cast %45 : vector<1x32x32xbf16> to vector<32x32xbf16>
    %47 = arith.truncf %43 : vector<32x128xf32> to vector<32x128xbf16>
    %cst_26 = arith.constant dense<0.000000e+00> : vector<32x128xf32>
    %48 = tpu.matmul %46, %47, %cst_26 {dimension_numbers = #tpu.dot_dimension_numbers<[1], [0], [0], [1], [0, 0, 1, 1], [], []>} : vector<32x32xbf16>, vector<32x128xbf16>, vector<32x128xf32> -> vector<32x128xf32>
    %49 = arith.index_cast %c2_i32 : i32 to index
    %c0_27 = arith.constant 0 : index
    %c0_28 = arith.constant 0 : index
    %50 = vector.load %arg6[%49, %c0_27, %c0_28] : memref<7x32x1xf32, #tpu.memory_space<vmem>>, vector<1x32x1xf32>
    %51 = vector.shape_cast %50 : vector<1x32x1xf32> to vector<32x1xf32>
    %52 = vector.broadcast %51 : vector<32x1xf32> to vector<32x128xf32>
    %53 = arith.addf %48, %52 : vector<32x128xf32>
    %cst_29 = arith.constant 0.000000e+00 : f32
    %54 = vector.broadcast %cst_29 : f32 to vector<32x128xf32>
    %55 = arith.cmpf ogt, %53, %54 : vector<32x128xf32>
    %cst_30 = arith.constant 0.00999999977 : f32
    %56 = vector.broadcast %cst_30 : f32 to vector<32x128xf32>
    %57 = arith.mulf %56, %53 : vector<32x128xf32>
    %58 = arith.select %55, %53, %57 : vector<32x128xi1>, vector<32x128xf32>
    %c3_i32 = arith.constant 3 : i32
    %59 = arith.index_cast %c3_i32 : i32 to index
    %c0_31 = arith.constant 0 : index
    %c0_32 = arith.constant 0 : index
    %60 = vector.load %arg5[%59, %c0_31, %c0_32] : memref<7x32x32xbf16, #tpu.memory_space<vmem>>, vector<1x32x32xbf16>
    %61 = vector.shape_cast %60 : vector<1x32x32xbf16> to vector<32x32xbf16>
    %62 = arith.truncf %58 : vector<32x128xf32> to vector<32x128xbf16>
    %cst_33 = arith.constant dense<0.000000e+00> : vector<32x128xf32>
    %63 = tpu.matmul %61, %62, %cst_33 {dimension_numbers = #tpu.dot_dimension_numbers<[1], [0], [0], [1], [0, 0, 1, 1], [], []>} : vector<32x32xbf16>, vector<32x128xbf16>, vector<32x128xf32> -> vector<32x128xf32>
    %64 = arith.index_cast %c3_i32 : i32 to index
    %c0_34 = arith.constant 0 : index
    %c0_35 = arith.constant 0 : index
    %65 = vector.load %arg6[%64, %c0_34, %c0_35] : memref<7x32x1xf32, #tpu.memory_space<vmem>>, vector<1x32x1xf32>
    %66 = vector.shape_cast %65 : vector<1x32x1xf32> to vector<32x1xf32>
    %67 = vector.broadcast %66 : vector<32x1xf32> to vector<32x128xf32>
    %68 = arith.addf %63, %67 : vector<32x128xf32>
    %cst_36 = arith.constant 0.000000e+00 : f32
    %69 = vector.broadcast %cst_36 : f32 to vector<32x128xf32>
    %70 = arith.cmpf ogt, %68, %69 : vector<32x128xf32>
    %cst_37 = arith.constant 0.00999999977 : f32
    %71 = vector.broadcast %cst_37 : f32 to vector<32x128xf32>
    %72 = arith.mulf %71, %68 : vector<32x128xf32>
    %73 = arith.select %70, %68, %72 : vector<32x128xi1>, vector<32x128xf32>
    %c4_i32 = arith.constant 4 : i32
    %74 = arith.index_cast %c4_i32 : i32 to index
    %c0_38 = arith.constant 0 : index
    %c0_39 = arith.constant 0 : index
    %75 = vector.load %arg5[%74, %c0_38, %c0_39] : memref<7x32x32xbf16, #tpu.memory_space<vmem>>, vector<1x32x32xbf16>
    %76 = vector.shape_cast %75 : vector<1x32x32xbf16> to vector<32x32xbf16>
    %77 = arith.truncf %73 : vector<32x128xf32> to vector<32x128xbf16>
    %cst_40 = arith.constant dense<0.000000e+00> : vector<32x128xf32>
    %78 = tpu.matmul %76, %77, %cst_40 {dimension_numbers = #tpu.dot_dimension_numbers<[1], [0], [0], [1], [0, 0, 1, 1], [], []>} : vector<32x32xbf16>, vector<32x128xbf16>, vector<32x128xf32> -> vector<32x128xf32>
    %79 = arith.index_cast %c4_i32 : i32 to index
    %c0_41 = arith.constant 0 : index
    %c0_42 = arith.constant 0 : index
    %80 = vector.load %arg6[%79, %c0_41, %c0_42] : memref<7x32x1xf32, #tpu.memory_space<vmem>>, vector<1x32x1xf32>
    %81 = vector.shape_cast %80 : vector<1x32x1xf32> to vector<32x1xf32>
    %82 = vector.broadcast %81 : vector<32x1xf32> to vector<32x128xf32>
    %83 = arith.addf %78, %82 : vector<32x128xf32>
    %cst_43 = arith.constant 0.000000e+00 : f32
    %84 = vector.broadcast %cst_43 : f32 to vector<32x128xf32>
    %85 = arith.cmpf ogt, %83, %84 : vector<32x128xf32>
    %cst_44 = arith.constant 0.00999999977 : f32
    %86 = vector.broadcast %cst_44 : f32 to vector<32x128xf32>
    %87 = arith.mulf %86, %83 : vector<32x128xf32>
    %88 = arith.select %85, %83, %87 : vector<32x128xi1>, vector<32x128xf32>
    %c5_i32 = arith.constant 5 : i32
    %89 = arith.index_cast %c5_i32 : i32 to index
    %c0_45 = arith.constant 0 : index
    %c0_46 = arith.constant 0 : index
    %90 = vector.load %arg5[%89, %c0_45, %c0_46] : memref<7x32x32xbf16, #tpu.memory_space<vmem>>, vector<1x32x32xbf16>
    %91 = vector.shape_cast %90 : vector<1x32x32xbf16> to vector<32x32xbf16>
    %92 = arith.truncf %88 : vector<32x128xf32> to vector<32x128xbf16>
    %cst_47 = arith.constant dense<0.000000e+00> : vector<32x128xf32>
    %93 = tpu.matmul %91, %92, %cst_47 {dimension_numbers = #tpu.dot_dimension_numbers<[1], [0], [0], [1], [0, 0, 1, 1], [], []>} : vector<32x32xbf16>, vector<32x128xbf16>, vector<32x128xf32> -> vector<32x128xf32>
    %94 = arith.index_cast %c5_i32 : i32 to index
    %c0_48 = arith.constant 0 : index
    %c0_49 = arith.constant 0 : index
    %95 = vector.load %arg6[%94, %c0_48, %c0_49] : memref<7x32x1xf32, #tpu.memory_space<vmem>>, vector<1x32x1xf32>
    %96 = vector.shape_cast %95 : vector<1x32x1xf32> to vector<32x1xf32>
    %97 = vector.broadcast %96 : vector<32x1xf32> to vector<32x128xf32>
    %98 = arith.addf %93, %97 : vector<32x128xf32>
    %cst_50 = arith.constant 0.000000e+00 : f32
    %99 = vector.broadcast %cst_50 : f32 to vector<32x128xf32>
    %100 = arith.cmpf ogt, %98, %99 : vector<32x128xf32>
    %cst_51 = arith.constant 0.00999999977 : f32
    %101 = vector.broadcast %cst_51 : f32 to vector<32x128xf32>
    %102 = arith.mulf %101, %98 : vector<32x128xf32>
    %103 = arith.select %100, %98, %102 : vector<32x128xi1>, vector<32x128xf32>
    %c6_i32 = arith.constant 6 : i32
    %104 = arith.index_cast %c6_i32 : i32 to index
    %c0_52 = arith.constant 0 : index
    %c0_53 = arith.constant 0 : index
    %105 = vector.load %arg5[%104, %c0_52, %c0_53] : memref<7x32x32xbf16, #tpu.memory_space<vmem>>, vector<1x32x32xbf16>
    %106 = vector.shape_cast %105 : vector<1x32x32xbf16> to vector<32x32xbf16>
    %107 = arith.truncf %103 : vector<32x128xf32> to vector<32x128xbf16>
    %cst_54 = arith.constant dense<0.000000e+00> : vector<32x128xf32>
    %108 = tpu.matmul %106, %107, %cst_54 {dimension_numbers = #tpu.dot_dimension_numbers<[1], [0], [0], [1], [0, 0, 1, 1], [], []>} : vector<32x32xbf16>, vector<32x128xbf16>, vector<32x128xf32> -> vector<32x128xf32>
    %109 = arith.index_cast %c6_i32 : i32 to index
    %c0_55 = arith.constant 0 : index
    %c0_56 = arith.constant 0 : index
    %110 = vector.load %arg6[%109, %c0_55, %c0_56] : memref<7x32x1xf32, #tpu.memory_space<vmem>>, vector<1x32x1xf32>
    %111 = vector.shape_cast %110 : vector<1x32x1xf32> to vector<32x1xf32>
    %112 = vector.broadcast %111 : vector<32x1xf32> to vector<32x128xf32>
    %113 = arith.addf %108, %112 : vector<32x128xf32>
    %cst_57 = arith.constant 0.000000e+00 : f32
    %114 = vector.broadcast %cst_57 : f32 to vector<32x128xf32>
    %115 = arith.cmpf ogt, %113, %114 : vector<32x128xf32>
    %cst_58 = arith.constant 0.00999999977 : f32
    %116 = vector.broadcast %cst_58 : f32 to vector<32x128xf32>
    %117 = arith.mulf %116, %113 : vector<32x128xf32>
    %118 = arith.select %115, %113, %117 : vector<32x128xi1>, vector<32x128xf32>
    %c7_i32 = arith.constant 7 : i32
    %c0_59 = arith.constant 0 : index
    %c0_60 = arith.constant 0 : index
    %119 = vector.load %arg7[%c0_59, %c0_60] : memref<8x32xbf16, #tpu.memory_space<vmem>>, vector<8x32xbf16>
    %120 = arith.truncf %118 : vector<32x128xf32> to vector<32x128xbf16>
    %cst_61 = arith.constant dense<0.000000e+00> : vector<8x128xf32>
    %121 = tpu.matmul %119, %120, %cst_61 {dimension_numbers = #tpu.dot_dimension_numbers<[1], [0], [0], [1], [0, 0, 1, 1], [], []>} : vector<8x32xbf16>, vector<32x128xbf16>, vector<8x128xf32> -> vector<8x128xf32>
    %c0_62 = arith.constant 0 : index
    %c0_63 = arith.constant 0 : index
    %122 = vector.load %arg8[%c0_62, %c0_63] : memref<8x1xf32, #tpu.memory_space<vmem>>, vector<8x1xf32>
    %123 = vector.broadcast %122 : vector<8x1xf32> to vector<8x128xf32>
    %124 = arith.addf %121, %123 : vector<8x128xf32>
    %cst_64 = arith.constant 5.000000e-01 : f32
    %125 = vector.broadcast %cst_64 : f32 to vector<8x128xf32>
    %126 = arith.mulf %125, %124 : vector<8x128xf32>
    %cst_65 = arith.constant 0.333333343 : f32
    %127 = vector.broadcast %cst_65 : f32 to vector<8x128xf32>
    %128 = arith.mulf %124, %127 : vector<8x128xf32>
    %cst_66 = arith.constant 1.000000e+00 : f32
    %129 = vector.broadcast %cst_66 : f32 to vector<8x128xf32>
    %130 = arith.addf %129, %128 : vector<8x128xf32>
    %131 = arith.mulf %126, %130 : vector<8x128xf32>
    %cst_67 = arith.constant 1.000000e+00 : f32
    %132 = vector.broadcast %cst_67 : f32 to vector<8x128xf32>
    %133 = arith.addf %132, %131 : vector<8x128xf32>
    %134 = arith.mulf %124, %133 : vector<8x128xf32>
    %135 = math.absf %124 : vector<8x128xf32>
    %cst_68 = arith.constant 0.00999999977 : f32
    %136 = vector.broadcast %cst_68 : f32 to vector<8x128xf32>
    %137 = arith.cmpf olt, %135, %136 : vector<8x128xf32>
    %138 = math.exp %124 : vector<8x128xf32>
    %cst_69 = arith.constant 1.000000e+00 : f32
    %139 = vector.broadcast %cst_69 : f32 to vector<8x128xf32>
    %140 = arith.subf %138, %139 : vector<8x128xf32>
    %141 = arith.select %137, %134, %140 : vector<8x128xi1>, vector<8x128xf32>
    %cst_70 = arith.constant 0.000000e+00 : f32
    %142 = vector.broadcast %cst_70 : f32 to vector<8x128xf32>
    %143 = arith.cmpf ogt, %124, %142 : vector<8x128xf32>
    %144 = arith.select %143, %124, %141 : vector<8x128xi1>, vector<8x128xf32>
    %c0_71 = arith.constant 0 : index
    %c0_72 = arith.constant 0 : index
    %145 = vector.load %arg9[%c0_71, %c0_72] : memref<8x128xf32, #tpu.memory_space<vmem>>, vector<8x128xf32>
    tpu.vector_store %arg9[%c0_71, %c0_72], %144 {strides = array<i32>} : memref<8x128xf32, #tpu.memory_space<vmem>>, vector<8x128xf32>,
    return
  }
  func.func @transform_0(%arg0: i32) -> (i32, i32) {
    %c0_i32 = arith.constant 0 : i32
    %c0_i32_0 = arith.constant 0 : i32
    return %c0_i32, %arg0 : i32, i32
  }
  func.func @transform_1(%arg0: i32) -> (i32, i32) {
    %c0_i32 = arith.constant 0 : i32
    %c0_i32_0 = arith.constant 0 : i32
    return %c0_i32, %arg0 : i32, i32
  }
  func.func @transform_2(%arg0: i32) -> (i32, i32) {
    %c0_i32 = arith.constant 0 : i32
    %c0_i32_0 = arith.constant 0 : i32
    %c0_i32_1 = arith.constant 0 : i32
    return %c0_i32, %c0_i32_0 : i32, i32
  }
  func.func @transform_3(%arg0: i32) -> (i32, i32) {
    %c0_i32 = arith.constant 0 : i32
    %c0_i32_0 = arith.constant 0 : i32
    %c0_i32_1 = arith.constant 0 : i32
    return %c0_i32, %c0_i32_0 : i32, i32
  }
  func.func @transform_4(%arg0: i32) -> (i32, i32, i32) {
    %c0_i32 = arith.constant 0 : i32
    %c0_i32_0 = arith.constant 0 : i32
    %c0_i32_1 = arith.constant 0 : i32
    %c0_i32_2 = arith.constant 0 : i32
    return %c0_i32, %c0_i32_0, %c0_i32_1 : i32, i32, i32
  }
  func.func @transform_5(%arg0: i32) -> (i32, i32, i32) {
    %c0_i32 = arith.constant 0 : i32
    %c0_i32_0 = arith.constant 0 : i32
    %c0_i32_1 = arith.constant 0 : i32
    %c0_i32_2 = arith.constant 0 : i32
    return %c0_i32, %c0_i32_0, %c0_i32_1 : i32, i32, i32
  }
  func.func @transform_6(%arg0: i32) -> (i32, i32) {
    %c0_i32 = arith.constant 0 : i32
    %c0_i32_0 = arith.constant 0 : i32
    %c0_i32_1 = arith.constant 0 : i32
    return %c0_i32, %c0_i32_0 : i32, i32
  }
  func.func @transform_7(%arg0: i32) -> (i32, i32) {
    %c0_i32 = arith.constant 0 : i32
    %c0_i32_0 = arith.constant 0 : i32
    %c0_i32_1 = arith.constant 0 : i32
    return %c0_i32, %c0_i32_0 : i32, i32
  }
  func.func @transform_8(%arg0: i32) -> (i32, i32) {
    %c0_i32 = arith.constant 0 : i32
    %c0_i32_0 = arith.constant 0 : i32
    return %c0_i32, %arg0 : i32, i32
  }
}

</mosaic_0001>

<llo_original>
// kernel: cgenerator_forward.1
$region0: #{cgenerator_forward.1}
  #allocation0 [shape = 'u32[]', space=smem, size = 0x4, offset = 0x4, fixed_abs, tag = 'smem constant byte address 0x4 - core index']
  #allocation1 [shape = 'u32[144,128]{1,0:T(1,128)}', space=vmem, size = 0x12000, scoped, tag = 'internal scratch']
  %s0 = inlined_call_operand.vmem [shape: s32[1,16], index: 0, kind: input, shape index: {}]
  %s1 = inlined_call_operand.vmem [shape: bf16[32,16], index: 1, kind: input, shape index: {}]
  %s2 = inlined_call_operand.vmem [shape: bf16[32,32], index: 2, kind: input, shape index: {}]
  %s3 = inlined_call_operand.vmem [shape: bf16[32,16], index: 3, kind: input, shape index: {}]
  %s4 = inlined_call_operand.vmem [shape: bf16[7,32,32], index: 4, kind: input, shape index: {}]
  %s5 = inlined_call_operand.vmem [shape: f32[7,32,1], index: 5, kind: input, shape index: {}]
  %s6 = inlined_call_operand.vmem [shape: bf16[8,32], index: 6, kind: input, shape index: {}]
  %s7 = inlined_call_operand.vmem [shape: f32[8,1], index: 7, kind: input, shape index: {}]
  %s8 = inlined_call_operand.vmem [shape: f32[8,16], index: 8, kind: output, shape index: {}]
  %s9 = sld [smem:[#allocation0]]
  $region42: #{cgenerator_forward.1} parent=0
    _
  %s11 = ssub.s32 1, %s9
  %s12 = scalar_select 0, %s11, %s9
  // Predicated region
  $region2: #{cgenerator_forward.1} parent=0 // pred_check
    _
  $region3: #{cgenerator_forward.1} parent=0 // pred_check_branch
    %14 = sbr.rel (0) target = $region5
  $region4: #{cgenerator_forward.1} parent=0 // pred_region
    _
  $region5: #{cgenerator_forward.1} parent=0 // pred_fallthru
    _
  // Predicated region
  $region6: #{cgenerator_forward.1} parent=0 // pred_check
    _
  $region7: #{cgenerator_forward.1} parent=0 // pred_check_branch
    %16 = sbr.rel (0) target = $region9
  $region8: #{cgenerator_forward.1} parent=0 // pred_region
    _
  $region9: #{cgenerator_forward.1} parent=0 // pred_fallthru
    _
  // Predicated region
  $region10: #{cgenerator_forward.1} parent=0 // pred_check
    _
  $region11: #{cgenerator_forward.1} parent=0 // pred_check_branch
    %18 = sbr.rel (0) target = $region13
  $region12: #{cgenerator_forward.1} parent=0 // pred_region
    _
  $region13: #{cgenerator_forward.1} parent=0 // pred_fallthru
    _
  // Predicated region
  $region14: #{cgenerator_forward.1} parent=0 // pred_check
    _
  $region15: #{cgenerator_forward.1} parent=0 // pred_check_branch
    %20 = sbr.rel (0) target = $region17
  $region16: #{cgenerator_forward.1} parent=0 // pred_region
    _
  $region17: #{cgenerator_forward.1} parent=0 // pred_fallthru
    _
  // Predicated region
  $region18: #{cgenerator_forward.1} parent=0 // pred_check
    _
  $region19: #{cgenerator_forward.1} parent=0 // pred_check_branch
    %22 = sbr.rel (0) target = $region21
  $region20: #{cgenerator_forward.1} parent=0 // pred_region
    _
  $region21: #{cgenerator_forward.1} parent=0 // pred_fallthru
    _
  // Predicated region
  $region22: #{cgenerator_forward.1} parent=0 // pred_check
    _
  $region23: #{cgenerator_forward.1} parent=0 // pred_check_branch
    %24 = sbr.rel (0) target = $region25
  $region24: #{cgenerator_forward.1} parent=0 // pred_region
    _
  $region25: #{cgenerator_forward.1} parent=0 // pred_fallthru
    _
  // Predicated region
  $region26: #{cgenerator_forward.1} parent=0 // pred_check
    _
  $region27: #{cgenerator_forward.1} parent=0 // pred_check_branch
    %26 = sbr.rel (0) target = $region29
  $region28: #{cgenerator_forward.1} parent=0 // pred_region
    _
  $region29: #{cgenerator_forward.1} parent=0 // pred_fallthru
    _
  // Predicated region
  $region30: #{cgenerator_forward.1} parent=0 // pred_check
    _
  $region31: #{cgenerator_forward.1} parent=0 // pred_check_branch
    %28 = sbr.rel (0) target = $region33
  $region32: #{cgenerator_forward.1} parent=0 // pred_region
    _
  $region33: #{cgenerator_forward.1} parent=0 // pred_fallthru
    _
  %v30 = vld [vmem:[%s0] sm:$0x1]
  %v31 = vlaneseq
  %v32 = vshrl.u32 %v31, 7
  %v33 = vadd.s32 %v32, 8
  %v34 = vlaneseq
  %v35 = vshrl.u32 %v34, 7
  %v36 = vsub.s32 0, %v35
  %v37 = vrot.slane %v30, %v36
  %vm38 = vcmp.eq.s32.totalorder %v32, %v37
  %vm39 = vcmp.eq.s32.totalorder %v33, %v37
  %v40 = vsel %vm38, 1.0, 0.0
  %v41 = vsel %vm39, 1.0, 0.0
  %v42 = vpack.c.bf16 %v41, %v40
  %v43 = vld [vmem:[%s2] sm:$0xf]
  %v44 = vld [vmem:[%s2 + $0x4] sm:$0xf]
  %v45 = vld [vmem:[%s2 + $0x8] sm:$0xf]
  %v46 = vld [vmem:[%s2 + $0xc] sm:$0xf]
  %v47 = vld [vmem:[%s1] sm:$0xf]
  %v48 = vld [vmem:[%s1 + $0x4] sm:$0xf]
  %v49 = vld [vmem:[%s1 + $0x8] sm:$0xf]
  %v50 = vld [vmem:[%s1 + $0xc] sm:$0xf]
  %v51 = vld [vmem:[%s3] sm:$0xf]
  %v52 = vld [vmem:[%s3 + $0x4] sm:$0xf]
  %v53 = vld [vmem:[%s3 + $0x8] sm:$0xf]
  %v54 = vld [vmem:[%s3 + $0xc] sm:$0xf]
  %v59 = vunpack.c.l.b16 %v51
  %v60 = vunpack.c.l.b16 %v52
  %v61 = vunpack.c.l.b16 %v53
  %v62 = vunpack.c.l.b16 %v54
  %v63 = vpack.c.b16 %v60, %v59
  %v64 = vpack.c.b16 %v62, %v61
  %vm65 = vcmask 130048
  %v67 = vsel %vm65, %v63, 0
  %v70 = vsel %vm65, %v64, 0
  %72 = vmatprep.subr.bf16.mxu0 0
  %73 = vmatpush1.bf16.msra.mxu0 0
  %74 = vmatprep.subr.bf16.mxu0 0
  %75 = vmatpush1.bf16.msra.mxu0 0
  %76 = vmatprep.subr.bf16.mxu0 0
  %77 = vmatpush1.bf16.msra.mxu0 0
  %78 = vmatprep.subr.bf16.mxu0 0
  %79 = vmatpush1.bf16.msra.mxu0 0
  %80 = vmatprep.subr.bf16.mxu0 0
  %81 = vmatpush1.bf16.msra.mxu0 0
  %82 = vmatprep.subr.bf16.mxu0 0
  %83 = vmatpush1.bf16.msra.mxu0 0
  %84 = vmatprep.subr.bf16.mxu0 0
  %85 = vmatpush1.bf16.msra.mxu0 0
  %86 = vmatprep.subr.bf16.mxu0 0
  %87 = vmatpush1.bf16.msra.mxu0 %v42
  %88 = vmatprep.subr.bf16.mxu0 0
  %89 = vmatpush2.bf16.msra.mxu0 0
  %90 = vmatprep.subr.bf16.mxu0 0
  %91 = vmatpush2.bf16.msra.mxu0 0
  %92 = vmatprep.subr.bf16.mxu0 0
  %93 = vmatpush2.bf16.msra.mxu0 0
  %94 = vmatprep.subr.bf16.mxu0 0
  %95 = vmatpush2.bf16.msra.mxu0 0
  %96 = vmatprep.subr.bf16.mxu0 0
  %97 = vmatpush2.bf16.msra.mxu0 0
  %98 = vmatprep.subr.bf16.mxu0 0
  %99 = vmatpush2.bf16.msra.mxu0 0
  %100 = vmatprep.subr.bf16.mxu0 0
  %101 = vmatpush2.bf16.msra.mxu0 0
  %102 = vmatprep.subr.bf16.mxu0 0
  %103 = vmatpush2.bf16.msra.mxu0 0
  %104 = vmatprep.mubr.bf16.mxu0 0
  %105 = vmatmul.mubr.bf16.gmra.mxu0 %v67
  %v106 = vpop.f32.mrf.mxu0
  %v107 = vadd.f32 0.0, %v106
  %v108 = vpop.f32.mrf.mxu0
  %v109 = vpop.f32.mrf.mxu0
  %v110 = vadd.f32 0.0, %v109
  %v111 = vpop.f32.mrf.mxu0
  %112 = vmatprep.mubr.bf16.mxu0 0
  %113 = vmatmul.mubr.bf16.gmra.mxu0 %v70
  %v114 = vpop.f32.mrf.mxu0
  %v115 = vadd.f32 0.0, %v114
  %v116 = vpop.f32.mrf.mxu0
  %v117 = vpop.f32.mrf.mxu0
  %v118 = vadd.f32 0.0, %v117
  %v119 = vpop.f32.mrf.mxu0
  %120 = vdwg.mxu0
  %v125 = vunpack.c.l.b16 %v43
  %v126 = vunpack.c.l.b16 %v44
  %v127 = vunpack.c.l.b16 %v45
  %v128 = vunpack.c.l.b16 %v46
  %v129 = vpack.c.b16 %v126, %v125
  %v130 = vpack.c.b16 %v128, %v127
  %v135 = vunpack.c.l.b16 %v47
  %v136 = vunpack.c.l.b16 %v48
  %v137 = vunpack.c.l.b16 %v49
  %v138 = vunpack.c.l.b16 %v50
  %v139 = vpack.c.b16 %v136, %v135
  %v140 = vpack.c.b16 %v138, %v137
  %vm143 = vcmask 261120
  %v145 = vsel %vm143, %v129, 0
  %v148 = vsel %vm143, %v130, 0
  %150 = vmatprep.subr.bf16.mxu0 0
  %151 = vmatpush1.bf16.msra.mxu0 0
  %152 = vmatprep.subr.bf16.mxu0 0
  %153 = vmatpush1.bf16.msra.mxu0 0
  %154 = vmatprep.subr.bf16.mxu0 0
  %155 = vmatpush1.bf16.msra.mxu0 0
  %156 = vmatprep.subr.bf16.mxu0 0
  %157 = vmatpush1.bf16.msra.mxu0 0
  %158 = vmatprep.subr.bf16.mxu0 0
  %159 = vmatpush1.bf16.msra.mxu0 0
  %160 = vmatprep.subr.bf16.mxu0 0
  %161 = vmatpush1.bf16.msra.mxu0 0
  %162 = vmatprep.subr.bf16.mxu0 0
  %163 = vmatpush1.bf16.msra.mxu0 %v140
  %164 = vmatprep.subr.bf16.mxu0 0
  %165 = vmatpush1.bf16.msra.mxu0 %v139
  %166 = vmatprep.subr.bf16.mxu0 0
  %167 = vmatpush2.bf16.msra.mxu0 0
  %168 = vmatprep.subr.bf16.mxu0 0
  %169 = vmatpush2.bf16.msra.mxu0 0
  %170 = vmatprep.subr.bf16.mxu0 0
  %171 = vmatpush2.bf16.msra.mxu0 0
  %172 = vmatprep.subr.bf16.mxu0 0
  %173 = vmatpush2.bf16.msra.mxu0 0
  %174 = vmatprep.subr.bf16.mxu0 0
  %175 = vmatpush2.bf16.msra.mxu0 0
  %176 = vmatprep.subr.bf16.mxu0 0
  %177 = vmatpush2.bf16.msra.mxu0 0
  %178 = vmatprep.subr.bf16.mxu0 0
  %179 = vmatpush2.bf16.msra.mxu0 0
  %180 = vmatprep.subr.bf16.mxu0 0
  %181 = vmatpush2.bf16.msra.mxu0 0
  %182 = vmatprep.mubr.bf16.mxu0 0
  %183 = vmatmul.mubr.bf16.gmra.mxu0 %v145
  %v184 = vpop.f32.mrf.mxu0
  %v185 = vadd.f32 %v107, %v184
  %v186 = vpop.f32.mrf.mxu0
  %v187 = vpop.f32.mrf.mxu0
  %v188 = vadd.f32 %v110, %v187
  %v189 = vpop.f32.mrf.mxu0
  %190 = vmatprep.mubr.bf16.mxu0 0
  %191 = vmatmul.mubr.bf16.gmra.mxu0 %v148
  %v192 = vpop.f32.mrf.mxu0
  %v193 = vadd.f32 %v115, %v192
  %v194 = vpop.f32.mrf.mxu0
  %v195 = vpop.f32.mrf.mxu0
  %v196 = vadd.f32 %v118, %v195
  %v197 = vpop.f32.mrf.mxu0
  %198 = vdwg.mxu0
  %v199 = vld [vmem:[%s4] sm:$0xf]
  %v200 = vld [vmem:[%s4 + $0x4] sm:$0xf]
  %v201 = vld [vmem:[%s4 + $0x8] sm:$0xf]
  %v202 = vld [vmem:[%s4 + $0xc] sm:$0xf]
  %v203 = vpack.c.bf16 %v188, %v185
  %v204 = vpack.c.bf16 %v196, %v193
  %v205 = vld [vmem:[%s5] sm:$0xff]
  %v206 = vld [vmem:[%s5 + $0x8] sm:$0xff]
  %v207 = vld [vmem:[%s5 + $0x10] sm:$0xff]
  %v208 = vld [vmem:[%s5 + $0x18] sm:$0xff]
  %210 = vset.pattern.permute.xlu0 0
  %211 = vperm.xlu0 %210, %v205
  %v212 = vpop.permute.xlu0 %211
  %215 = vset.pattern.permute.xlu0 0
  %216 = vperm.xlu0 %215, %v206
  %v217 = vpop.permute.xlu0 %216
  %220 = vset.pattern.permute.xlu0 0
  %221 = vperm.xlu0 %220, %v207
  %v222 = vpop.permute.xlu0 %221
  %225 = vset.pattern.permute.xlu0 0
  %226 = vperm.xlu0 %225, %v208
  %v227 = vpop.permute.xlu0 %226
  %v233 = vunpack.c.l.b16 %v199
  %v234 = vunpack.c.l.b16 %v200
  %v235 = vunpack.c.l.b16 %v201
  %v236 = vunpack.c.l.b16 %v202
  %v237 = vpack.c.b16 %v234, %v233
  %v238 = vpack.c.b16 %v236, %v235
  %v240 = vsel %vm143, %v237, 0
  %v243 = vsel %vm143, %v238, 0
  %245 = vmatprep.subr.bf16.mxu0 0
  %246 = vmatpush1.bf16.msra.mxu0 0
  %247 = vmatprep.subr.bf16.mxu0 0
  %248 = vmatpush1.bf16.msra.mxu0 0
  %249 = vmatprep.subr.bf16.mxu0 0
  %250 = vmatpush1.bf16.msra.mxu0 0
  %251 = vmatprep.subr.bf16.mxu0 0
  %252 = vmatpush1.bf16.msra.mxu0 0
  %253 = vmatprep.subr.bf16.mxu0 0
  %254 = vmatpush1.bf16.msra.mxu0 0
  %255 = vmatprep.subr.bf16.mxu0 0
  %256 = vmatpush1.bf16.msra.mxu0 0
  %257 = vmatprep.subr.bf16.mxu0 0
  %258 = vmatpush1.bf16.msra.mxu0 %v204
  %259 = vmatprep.subr.bf16.mxu0 0
  %260 = vmatpush1.bf16.msra.mxu0 %v203
  %261 = vmatprep.subr.bf16.mxu0 0
  %262 = vmatpush2.bf16.msra.mxu0 0
  %263 = vmatprep.subr.bf16.mxu0 0
  %264 = vmatpush2.bf16.msra.mxu0 0
  %265 = vmatprep.subr.bf16.mxu0 0
  %266 = vmatpush2.bf16.msra.mxu0 0
  %267 = vmatprep.subr.bf16.mxu0 0
  %268 = vmatpush2.bf16.msra.mxu0 0
  %269 = vmatprep.subr.bf16.mxu0 0
  %270 = vmatpush2.bf16.msra.mxu0 0
  %271 = vmatprep.subr.bf16.mxu0 0
  %272 = vmatpush2.bf16.msra.mxu0 0
  %273 = vmatprep.subr.bf16.mxu0 0
  %274 = vmatpush2.bf16.msra.mxu0 0
  %275 = vmatprep.subr.bf16.mxu0 0
  %276 = vmatpush2.bf16.msra.mxu0 0
  %277 = vmatprep.mubr.bf16.mxu0 0
  %278 = vmatmul.mubr.bf16.gmra.mxu0 %v240
  %v279 = vpop.f32.mrf.mxu0
  %v280 = vadd.f32 %v212, %v279
  %v281 = vpop.f32.mrf.mxu0
  %v282 = vpop.f32.mrf.mxu0
  %v283 = vadd.f32 %v217, %v282
  %v284 = vpop.f32.mrf.mxu0
  %285 = vmatprep.mubr.bf16.mxu0 0
  %286 = vmatmul.mubr.bf16.gmra.mxu0 %v243
  %v287 = vpop.f32.mrf.mxu0
  %v288 = vadd.f32 %v222, %v287
  %v289 = vpop.f32.mrf.mxu0
  %v290 = vpop.f32.mrf.mxu0
  %v291 = vadd.f32 %v227, %v290
  %v292 = vpop.f32.mrf.mxu0
  %293 = vdwg.mxu0
  %vm294 = vcmp.gt.f32.partialorder %v280, 0.0
  %vm295 = vcmp.gt.f32.partialorder %v283, 0.0
  %vm296 = vcmp.gt.f32.partialorder %v288, 0.0
  %vm297 = vcmp.gt.f32.partialorder %v291, 0.0
  %v298 = vmul.f32 %v280, 0.01
  %v299 = vmul.f32 %v283, 0.01
  %v300 = vmul.f32 %v288, 0.01
  %v301 = vmul.f32 %v291, 0.01
  %v302 = vsel %vm294, %v280, %v298
  %v303 = vsel %vm295, %v283, %v299
  %v304 = vsel %vm296, %v288, %v300
  %v305 = vsel %vm297, %v291, %v301
  %s306 = scalar_lea.vmem %s4, 16
  %v307 = vld [vmem:[%s306] sm:$0xf]
  %v308 = vld [vmem:[%s306 + $0x4] sm:$0xf]
  %v309 = vld [vmem:[%s306 + $0x8] sm:$0xf]
  %v310 = vld [vmem:[%s306 + $0xc] sm:$0xf]
  %v311 = vpack.c.bf16 %v303, %v302
  %v312 = vpack.c.bf16 %v305, %v304
  %s313 = scalar_lea.vmem %s5, 32
  %v314 = vld [vmem:[%s313] sm:$0xff]
  %v315 = vld [vmem:[%s313 + $0x8] sm:$0xff]
  %v316 = vld [vmem:[%s313 + $0x10] sm:$0xff]
  %v317 = vld [vmem:[%s313 + $0x18] sm:$0xff]
  %319 = vset.pattern.permute.xlu0 0
  %320 = vperm.xlu0 %319, %v314
  %v321 = vpop.permute.xlu0 %320
  %324 = vset.pattern.permute.xlu0 0
  %325 = vperm.xlu0 %324, %v315
  %v326 = vpop.permute.xlu0 %325
  %329 = vset.pattern.permute.xlu0 0
  %330 = vperm.xlu0 %329, %v316
  %v331 = vpop.permute.xlu0 %330
  %334 = vset.pattern.permute.xlu0 0
  %335 = vperm.xlu0 %334, %v317
  %v336 = vpop.permute.xlu0 %335
  %v342 = vunpack.c.l.b16 %v307
  %v343 = vunpack.c.l.b16 %v308
  %v344 = vunpack.c.l.b16 %v309
  %v345 = vunpack.c.l.b16 %v310
  %v346 = vpack.c.b16 %v343, %v342
  %v347 = vpack.c.b16 %v345, %v344
  %v349 = vsel %vm143, %v346, 0
  %v352 = vsel %vm143, %v347, 0
  %354 = vmatprep.subr.bf16.mxu0 0
  %355 = vmatpush1.bf16.msra.mxu0 0
  %356 = vmatprep.subr.bf16.mxu0 0
  %357 = vmatpush1.bf16.msra.mxu0 0
  %358 = vmatprep.subr.bf16.mxu0 0
  %359 = vmatpush1.bf16.msra.mxu0 0
  %360 = vmatprep.subr.bf16.mxu0 0
  %361 = vmatpush1.bf16.msra.mxu0 0
  %362 = vmatprep.subr.bf16.mxu0 0
  %363 = vmatpush1.bf16.msra.mxu0 0
  %364 = vmatprep.subr.bf16.mxu0 0
  %365 = vmatpush1.bf16.msra.mxu0 0
  %366 = vmatprep.subr.bf16.mxu0 0
  %367 = vmatpush1.bf16.msra.mxu0 %v312
  %368 = vmatprep.subr.bf16.mxu0 0
  %369 = vmatpush1.bf16.msra.mxu0 %v311
  %370 = vmatprep.subr.bf16.mxu0 0
  %371 = vmatpush2.bf16.msra.mxu0 0
  %372 = vmatprep.subr.bf16.mxu0 0
  %373 = vmatpush2.bf16.msra.mxu0 0
  %374 = vmatprep.subr.bf16.mxu0 0
  %375 = vmatpush2.bf16.msra.mxu0 0
  %376 = vmatprep.subr.bf16.mxu0 0
  %377 = vmatpush2.bf16.msra.mxu0 0
  %378 = vmatprep.subr.bf16.mxu0 0
  %379 = vmatpush2.bf16.msra.mxu0 0
  %380 = vmatprep.subr.bf16.mxu0 0
  %381 = vmatpush2.bf16.msra.mxu0 0
  %382 = vmatprep.subr.bf16.mxu0 0
  %383 = vmatpush2.bf16.msra.mxu0 0
  %384 = vmatprep.subr.bf16.mxu0 0
  %385 = vmatpush2.bf16.msra.mxu0 0
  %386 = vmatprep.mubr.bf16.mxu0 0
  %387 = vmatmul.mubr.bf16.gmra.mxu0 %v349
  %v388 = vpop.f32.mrf.mxu0
  %v389 = vadd.f32 %v321, %v388
  %v390 = vpop.f32.mrf.mxu0
  %v391 = vpop.f32.mrf.mxu0
  %v392 = vadd.f32 %v326, %v391
  %v393 = vpop.f32.mrf.mxu0
  %394 = vmatprep.mubr.bf16.mxu0 0
  %395 = vmatmul.mubr.bf16.gmra.mxu0 %v352
  %v396 = vpop.f32.mrf.mxu0
  %v397 = vadd.f32 %v331, %v396
  %v398 = vpop.f32.mrf.mxu0
  %v399 = vpop.f32.mrf.mxu0
  %v400 = vadd.f32 %v336, %v399
  %v401 = vpop.f32.mrf.mxu0
  %402 = vdwg.mxu0
  %vm403 = vcmp.gt.f32.partialorder %v389, 0.0
  %vm404 = vcmp.gt.f32.partialorder %v392, 0.0
  %vm405 = vcmp.gt.f32.partialorder %v397, 0.0
  %vm406 = vcmp.gt.f32.partialorder %v400, 0.0
  %v407 = vmul.f32 %v389, 0.01
  %v408 = vmul.f32 %v392, 0.01
  %v409 = vmul.f32 %v397, 0.01
  %v410 = vmul.f32 %v400, 0.01
  %v411 = vsel %vm403, %v389, %v407
  %v412 = vsel %vm404, %v392, %v408
  %v413 = vsel %vm405, %v397, %v409
  %v414 = vsel %vm406, %v400, %v410
  %s415 = scalar_lea.vmem %s4, 32
  %v416 = vld [vmem:[%s415] sm:$0xf]
  %v417 = vld [vmem:[%s415 + $0x4] sm:$0xf]
  %v418 = vld [vmem:[%s415 + $0x8] sm:$0xf]
  %v419 = vld [vmem:[%s415 + $0xc] sm:$0xf]
  %v420 = vpack.c.bf16 %v412, %v411
  %v421 = vpack.c.bf16 %v414, %v413
  %s422 = scalar_lea.vmem %s5, 64
  %v423 = vld [vmem:[%s422] sm:$0xff]
  %v424 = vld [vmem:[%s422 + $0x8] sm:$0xff]
  %v425 = vld [vmem:[%s422 + $0x10] sm:$0xff]
  %v426 = vld [vmem:[%s422 + $0x18] sm:$0xff]
  %428 = vset.pattern.permute.xlu0 0
  %429 = vperm.xlu0 %428, %v423
  %v430 = vpop.permute.xlu0 %429
  %433 = vset.pattern.permute.xlu0 0
  %434 = vperm.xlu0 %433, %v424
  %v435 = vpop.permute.xlu0 %434
  %438 = vset.pattern.permute.xlu0 0
  %439 = vperm.xlu0 %438, %v425
  %v440 = vpop.permute.xlu0 %439
  %443 = vset.pattern.permute.xlu0 0
  %444 = vperm.xlu0 %443, %v426
  %v445 = vpop.permute.xlu0 %444
  %v451 = vunpack.c.l.b16 %v416
  %v452 = vunpack.c.l.b16 %v417
  %v453 = vunpack.c.l.b16 %v418
  %v454 = vunpack.c.l.b16 %v419
  %v455 = vpack.c.b16 %v452, %v451
  %v456 = vpack.c.b16 %v454, %v453
  %v458 = vsel %vm143, %v455, 0
  %v461 = vsel %vm143, %v456, 0
  %463 = vmatprep.subr.bf16.mxu0 0
  %464 = vmatpush1.bf16.msra.mxu0 0
  %465 = vmatprep.subr.bf16.mxu0 0
  %466 = vmatpush1.bf16.msra.mxu0 0
  %467 = vmatprep.subr.bf16.mxu0 0
  %468 = vmatpush1.bf16.msra.mxu0 0
  %469 = vmatprep.subr.bf16.mxu0 0
  %470 = vmatpush1.bf16.msra.mxu0 0
  %471 = vmatprep.subr.bf16.mxu0 0
  %472 = vmatpush1.bf16.msra.mxu0 0
  %473 = vmatprep.subr.bf16.mxu0 0
  %474 = vmatpush1.bf16.msra.mxu0 0
  %475 = vmatprep.subr.bf16.mxu0 0
  %476 = vmatpush1.bf16.msra.mxu0 %v421
  %477 = vmatprep.subr.bf16.mxu0 0
  %478 = vmatpush1.bf16.msra.mxu0 %v420
  %479 = vmatprep.subr.bf16.mxu0 0
  %480 = vmatpush2.bf16.msra.mxu0 0
  %481 = vmatprep.subr.bf16.mxu0 0
  %482 = vmatpush2.bf16.msra.mxu0 0
  %483 = vmatprep.subr.bf16.mxu0 0
  %484 = vmatpush2.bf16.msra.mxu0 0
  %485 = vmatprep.subr.bf16.mxu0 0
  %486 = vmatpush2.bf16.msra.mxu0 0
  %487 = vmatprep.subr.bf16.mxu0 0
  %488 = vmatpush2.bf16.msra.mxu0 0
  %489 = vmatprep.subr.bf16.mxu0 0
  %490 = vmatpush2.bf16.msra.mxu0 0
  %491 = vmatprep.subr.bf16.mxu0 0
  %492 = vmatpush2.bf16.msra.mxu0 0
  %493 = vmatprep.subr.bf16.mxu0 0
  %494 = vmatpush2.bf16.msra.mxu0 0
  %495 = vmatprep.mubr.bf16.mxu0 0
  %496 = vmatmul.mubr.bf16.gmra.mxu0 %v458
  %v497 = vpop.f32.mrf.mxu0
  %v498 = vadd.f32 %v430, %v497
  %v499 = vpop.f32.mrf.mxu0
  %v500 = vpop.f32.mrf.mxu0
  %v501 = vadd.f32 %v435, %v500
  %v502 = vpop.f32.mrf.mxu0
  %503 = vmatprep.mubr.bf16.mxu0 0
  %504 = vmatmul.mubr.bf16.gmra.mxu0 %v461
  %v505 = vpop.f32.mrf.mxu0
  %v506 = vadd.f32 %v440, %v505
  %v507 = vpop.f32.mrf.mxu0
  %v508 = vpop.f32.mrf.mxu0
  %v509 = vadd.f32 %v445, %v508
  %v510 = vpop.f32.mrf.mxu0
  %511 = vdwg.mxu0
  %vm512 = vcmp.gt.f32.partialorder %v498, 0.0
  %vm513 = vcmp.gt.f32.partialorder %v501, 0.0
  %vm514 = vcmp.gt.f32.partialorder %v506, 0.0
  %vm515 = vcmp.gt.f32.partialorder %v509, 0.0
  %v516 = vmul.f32 %v498, 0.01
  %v517 = vmul.f32 %v501, 0.01
  %v518 = vmul.f32 %v506, 0.01
  %v519 = vmul.f32 %v509, 0.01
  %v520 = vsel %vm512, %v498, %v516
  %v521 = vsel %vm513, %v501, %v517
  %v522 = vsel %vm514, %v506, %v518
  %v523 = vsel %vm515, %v509, %v519
  %s524 = scalar_lea.vmem %s4, 48
  %v525 = vld [vmem:[%s524] sm:$0xf]
  %v526 = vld [vmem:[%s524 + $0x4] sm:$0xf]
  %v527 = vld [vmem:[%s524 + $0x8] sm:$0xf]
  %v528 = vld [vmem:[%s524 + $0xc] sm:$0xf]
  %v529 = vpack.c.bf16 %v521, %v520
  %v530 = vpack.c.bf16 %v523, %v522
  %s531 = scalar_lea.vmem %s5, 96
  %v532 = vld [vmem:[%s531] sm:$0xff]
  %v533 = vld [vmem:[%s531 + $0x8] sm:$0xff]
  %v534 = vld [vmem:[%s531 + $0x10] sm:$0xff]
  %v535 = vld [vmem:[%s531 + $0x18] sm:$0xff]
  %537 = vset.pattern.permute.xlu0 0
  %538 = vperm.xlu0 %537, %v532
  %v539 = vpop.permute.xlu0 %538
  %542 = vset.pattern.permute.xlu0 0
  %543 = vperm.xlu0 %542, %v533
  %v544 = vpop.permute.xlu0 %543
  %547 = vset.pattern.permute.xlu0 0
  %548 = vperm.xlu0 %547, %v534
  %v549 = vpop.permute.xlu0 %548
  %552 = vset.pattern.permute.xlu0 0
  %553 = vperm.xlu0 %552, %v535
  %v554 = vpop.permute.xlu0 %553
  %v560 = vunpack.c.l.b16 %v525
  %v561 = vunpack.c.l.b16 %v526
  %v562 = vunpack.c.l.b16 %v527
  %v563 = vunpack.c.l.b16 %v528
  %v564 = vpack.c.b16 %v561, %v560
  %v565 = vpack.c.b16 %v563, %v562
  %v567 = vsel %vm143, %v564, 0
  %v570 = vsel %vm143, %v565, 0
  %572 = vmatprep.subr.bf16.mxu0 0
  %573 = vmatpush1.bf16.msra.mxu0 0
  %574 = vmatprep.subr.bf16.mxu0 0
  %575 = vmatpush1.bf16.msra.mxu0 0
  %576 = vmatprep.subr.bf16.mxu0 0
  %577 = vmatpush1.bf16.msra.mxu0 0
  %578 = vmatprep.subr.bf16.mxu0 0
  %579 = vmatpush1.bf16.msra.mxu0 0
  %580 = vmatprep.subr.bf16.mxu0 0
  %581 = vmatpush1.bf16.msra.mxu0 0
  %582 = vmatprep.subr.bf16.mxu0 0
  %583 = vmatpush1.bf16.msra.mxu0 0
  %584 = vmatprep.subr.bf16.mxu0 0
  %585 = vmatpush1.bf16.msra.mxu0 %v530
  %586 = vmatprep.subr.bf16.mxu0 0
  %587 = vmatpush1.bf16.msra.mxu0 %v529
  %588 = vmatprep.subr.bf16.mxu0 0
  %589 = vmatpush2.bf16.msra.mxu0 0
  %590 = vmatprep.subr.bf16.mxu0 0
  %591 = vmatpush2.bf16.msra.mxu0 0
  %592 = vmatprep.subr.bf16.mxu0 0
  %593 = vmatpush2.bf16.msra.mxu0 0
  %594 = vmatprep.subr.bf16.mxu0 0
  %595 = vmatpush2.bf16.msra.mxu0 0
  %596 = vmatprep.subr.bf16.mxu0 0
  %597 = vmatpush2.bf16.msra.mxu0 0
  %598 = vmatprep.subr.bf16.mxu0 0
  %599 = vmatpush2.bf16.msra.mxu0 0
  %600 = vmatprep.subr.bf16.mxu0 0
  %601 = vmatpush2.bf16.msra.mxu0 0
  %602 = vmatprep.subr.bf16.mxu0 0
  %603 = vmatpush2.bf16.msra.mxu0 0
  %604 = vmatprep.mubr.bf16.mxu0 0
  %605 = vmatmul.mubr.bf16.gmra.mxu0 %v567
  %v606 = vpop.f32.mrf.mxu0
  %v607 = vadd.f32 %v539, %v606
  %v608 = vpop.f32.mrf.mxu0
  %v609 = vpop.f32.mrf.mxu0
  %v610 = vadd.f32 %v544, %v609
  %v611 = vpop.f32.mrf.mxu0
  %612 = vmatprep.mubr.bf16.mxu0 0
  %613 = vmatmul.mubr.bf16.gmra.mxu0 %v570
  %v614 = vpop.f32.mrf.mxu0
  %v615 = vadd.f32 %v549, %v614
  %v616 = vpop.f32.mrf.mxu0
  %v617 = vpop.f32.mrf.mxu0
  %v618 = vadd.f32 %v554, %v617
  %v619 = vpop.f32.mrf.mxu0
  %620 = vdwg.mxu0
  %vm621 = vcmp.gt.f32.partialorder %v607, 0.0
  %vm622 = vcmp.gt.f32.partialorder %v610, 0.0
  %vm623 = vcmp.gt.f32.partialorder %v615, 0.0
  %vm624 = vcmp.gt.f32.partialorder %v618, 0.0
  %v625 = vmul.f32 %v607, 0.01
  %v626 = vmul.f32 %v610, 0.01
  %v627 = vmul.f32 %v615, 0.01
  %v628 = vmul.f32 %v618, 0.01
  %v629 = vsel %vm621, %v607, %v625
  %v630 = vsel %vm622, %v610, %v626
  %v631 = vsel %vm623, %v615, %v627
  %v632 = vsel %vm624, %v618, %v628
  %s633 = scalar_lea.vmem %s4, 64
  %v634 = vld [vmem:[%s633] sm:$0xf]
  %v635 = vld [vmem:[%s633 + $0x4] sm:$0xf]
  %v636 = vld [vmem:[%s633 + $0x8] sm:$0xf]
  %v637 = vld [vmem:[%s633 + $0xc] sm:$0xf]
  %v638 = vpack.c.bf16 %v630, %v629
  %v639 = vpack.c.bf16 %v632, %v631
  %s640 = scalar_lea.vmem %s5, 128
  %v641 = vld [vmem:[%s640] sm:$0xff]
  %v642 = vld [vmem:[%s640 + $0x8] sm:$0xff]
  %v643 = vld [vmem:[%s640 + $0x10] sm:$0xff]
  %v644 = vld [vmem:[%s640 + $0x18] sm:$0xff]
  %646 = vset.pattern.permute.xlu0 0
  %647 = vperm.xlu0 %646, %v641
  %v648 = vpop.permute.xlu0 %647
  %651 = vset.pattern.permute.xlu0 0
  %652 = vperm.xlu0 %651, %v642
  %v653 = vpop.permute.xlu0 %652
  %656 = vset.pattern.permute.xlu0 0
  %657 = vperm.xlu0 %656, %v643
  %v658 = vpop.permute.xlu0 %657
  %661 = vset.pattern.permute.xlu0 0
  %662 = vperm.xlu0 %661, %v644
  %v663 = vpop.permute.xlu0 %662
  %v669 = vunpack.c.l.b16 %v634
  %v670 = vunpack.c.l.b16 %v635
  %v671 = vunpack.c.l.b16 %v636
  %v672 = vunpack.c.l.b16 %v637
  %v673 = vpack.c.b16 %v670, %v669
  %v674 = vpack.c.b16 %v672, %v671
  %v676 = vsel %vm143, %v673, 0
  %v679 = vsel %vm143, %v674, 0
  %681 = vmatprep.subr.bf16.mxu0 0
  %682 = vmatpush1.bf16.msra.mxu0 0
  %683 = vmatprep.subr.bf16.mxu0 0
  %684 = vmatpush1.bf16.msra.mxu0 0
  %685 = vmatprep.subr.bf16.mxu0 0
  %686 = vmatpush1.bf16.msra.mxu0 0
  %687 = vmatprep.subr.bf16.mxu0 0
  %688 = vmatpush1.bf16.msra.mxu0 0
  %689 = vmatprep.subr.bf16.mxu0 0
  %690 = vmatpush1.bf16.msra.mxu0 0
  %691 = vmatprep.subr.bf16.mxu0 0
  %692 = vmatpush1.bf16.msra.mxu0 0
  %693 = vmatprep.subr.bf16.mxu0 0
  %694 = vmatpush1.bf16.msra.mxu0 %v639
  %695 = vmatprep.subr.bf16.mxu0 0
  %696 = vmatpush1.bf16.msra.mxu0 %v638
  %697 = vmatprep.subr.bf16.mxu0 0
  %698 = vmatpush2.bf16.msra.mxu0 0
  %699 = vmatprep.subr.bf16.mxu0 0
  %700 = vmatpush2.bf16.msra.mxu0 0
  %701 = vmatprep.subr.bf16.mxu0 0
  %702 = vmatpush2.bf16.msra.mxu0 0
  %703 = vmatprep.subr.bf16.mxu0 0
  %704 = vmatpush2.bf16.msra.mxu0 0
  %705 = vmatprep.subr.bf16.mxu0 0
  %706 = vmatpush2.bf16.msra.mxu0 0
  %707 = vmatprep.subr.bf16.mxu0 0
  %708 = vmatpush2.bf16.msra.mxu0 0
  %709 = vmatprep.subr.bf16.mxu0 0
  %710 = vmatpush2.bf16.msra.mxu0 0
  %711 = vmatprep.subr.bf16.mxu0 0
  %712 = vmatpush2.bf16.msra.mxu0 0
  %713 = vmatprep.mubr.bf16.mxu0 0
  %714 = vmatmul.mubr.bf16.gmra.mxu0 %v676
  %v715 = vpop.f32.mrf.mxu0
  %v716 = vadd.f32 %v648, %v715
  %v717 = vpop.f32.mrf.mxu0
  %v718 = vpop.f32.mrf.mxu0
  %v719 = vadd.f32 %v653, %v718
  %v720 = vpop.f32.mrf.mxu0
  %721 = vmatprep.mubr.bf16.mxu0 0
  %722 = vmatmul.mubr.bf16.gmra.mxu0 %v679
  %v723 = vpop.f32.mrf.mxu0
  %v724 = vadd.f32 %v658, %v723
  %v725 = vpop.f32.mrf.mxu0
  %v726 = vpop.f32.mrf.mxu0
  %v727 = vadd.f32 %v663, %v726
  %v728 = vpop.f32.mrf.mxu0
  %729 = vdwg.mxu0
  %vm730 = vcmp.gt.f32.partialorder %v716, 0.0
  %vm731 = vcmp.gt.f32.partialorder %v719, 0.0
  %vm732 = vcmp.gt.f32.partialorder %v724, 0.0
  %vm733 = vcmp.gt.f32.partialorder %v727, 0.0
  %v734 = vmul.f32 %v716, 0.01
  %v735 = vmul.f32 %v719, 0.01
  %v736 = vmul.f32 %v724, 0.01
  %v737 = vmul.f32 %v727, 0.01
  %v738 = vsel %vm730, %v716, %v734
  %v739 = vsel %vm731, %v719, %v735
  %v740 = vsel %vm732, %v724, %v736
  %v741 = vsel %vm733, %v727, %v737
  %s742 = scalar_lea.vmem %s4, 80
  %v743 = vld [vmem:[%s742] sm:$0xf]
  %v744 = vld [vmem:[%s742 + $0x4] sm:$0xf]
  %v745 = vld [vmem:[%s742 + $0x8] sm:$0xf]
  %v746 = vld [vmem:[%s742 + $0xc] sm:$0xf]
  %v747 = vpack.c.bf16 %v739, %v738
  %v748 = vpack.c.bf16 %v741, %v740
  %s749 = scalar_lea.vmem %s5, 160
  %v750 = vld [vmem:[%s749] sm:$0xff]
  %v751 = vld [vmem:[%s749 + $0x8] sm:$0xff]
  %v752 = vld [vmem:[%s749 + $0x10] sm:$0xff]
  %v753 = vld [vmem:[%s749 + $0x18] sm:$0xff]
  %755 = vset.pattern.permute.xlu0 0
  %756 = vperm.xlu0 %755, %v750
  %v757 = vpop.permute.xlu0 %756
  %760 = vset.pattern.permute.xlu0 0
  %761 = vperm.xlu0 %760, %v751
  %v762 = vpop.permute.xlu0 %761
  %765 = vset.pattern.permute.xlu0 0
  %766 = vperm.xlu0 %765, %v752
  %v767 = vpop.permute.xlu0 %766
  %770 = vset.pattern.permute.xlu0 0
  %771 = vperm.xlu0 %770, %v753
  %v772 = vpop.permute.xlu0 %771
  %v778 = vunpack.c.l.b16 %v743
  %v779 = vunpack.c.l.b16 %v744
  %v780 = vunpack.c.l.b16 %v745
  %v781 = vunpack.c.l.b16 %v746
  %v782 = vpack.c.b16 %v779, %v778
  %v783 = vpack.c.b16 %v781, %v780
  %v785 = vsel %vm143, %v782, 0
  %v788 = vsel %vm143, %v783, 0
  %790 = vmatprep.subr.bf16.mxu0 0
  %791 = vmatpush1.bf16.msra.mxu0 0
  %792 = vmatprep.subr.bf16.mxu0 0
  %793 = vmatpush1.bf16.msra.mxu0 0
  %794 = vmatprep.subr.bf16.mxu0 0
  %795 = vmatpush1.bf16.msra.mxu0 0
  %796 = vmatprep.subr.bf16.mxu0 0
  %797 = vmatpush1.bf16.msra.mxu0 0
  %798 = vmatprep.subr.bf16.mxu0 0
  %799 = vmatpush1.bf16.msra.mxu0 0
  %800 = vmatprep.subr.bf16.mxu0 0
  %801 = vmatpush1.bf16.msra.mxu0 0
  %802 = vmatprep.subr.bf16.mxu0 0
  %803 = vmatpush1.bf16.msra.mxu0 %v748
  %804 = vmatprep.subr.bf16.mxu0 0
  %805 = vmatpush1.bf16.msra.mxu0 %v747
  %806 = vmatprep.subr.bf16.mxu0 0
  %807 = vmatpush2.bf16.msra.mxu0 0
  %808 = vmatprep.subr.bf16.mxu0 0
  %809 = vmatpush2.bf16.msra.mxu0 0
  %810 = vmatprep.subr.bf16.mxu0 0
  %811 = vmatpush2.bf16.msra.mxu0 0
  %812 = vmatprep.subr.bf16.mxu0 0
  %813 = vmatpush2.bf16.msra.mxu0 0
  %814 = vmatprep.subr.bf16.mxu0 0
  %815 = vmatpush2.bf16.msra.mxu0 0
  %816 = vmatprep.subr.bf16.mxu0 0
  %817 = vmatpush2.bf16.msra.mxu0 0
  %818 = vmatprep.subr.bf16.mxu0 0
  %819 = vmatpush2.bf16.msra.mxu0 0
  %820 = vmatprep.subr.bf16.mxu0 0
  %821 = vmatpush2.bf16.msra.mxu0 0
  %822 = vmatprep.mubr.bf16.mxu0 0
  %823 = vmatmul.mubr.bf16.gmra.mxu0 %v785
  %v824 = vpop.f32.mrf.mxu0
  %v825 = vadd.f32 %v757, %v824
  %v826 = vpop.f32.mrf.mxu0
  %v827 = vpop.f32.mrf.mxu0
  %v828 = vadd.f32 %v762, %v827
  %v829 = vpop.f32.mrf.mxu0
  %830 = vmatprep.mubr.bf16.mxu0 0
  %831 = vmatmul.mubr.bf16.gmra.mxu0 %v788
  %v832 = vpop.f32.mrf.mxu0
  %v833 = vadd.f32 %v767, %v832
  %v834 = vpop.f32.mrf.mxu0
  %v835 = vpop.f32.mrf.mxu0
  %v836 = vadd.f32 %v772, %v835
  %v837 = vpop.f32.mrf.mxu0
  %838 = vdwg.mxu0
  %vm839 = vcmp.gt.f32.partialorder %v825, 0.0
  %vm840 = vcmp.gt.f32.partialorder %v828, 0.0
  %vm841 = vcmp.gt.f32.partialorder %v833, 0.0
  %vm842 = vcmp.gt.f32.partialorder %v836, 0.0
  %v843 = vmul.f32 %v825, 0.01
  %v844 = vmul.f32 %v828, 0.01
  %v845 = vmul.f32 %v833, 0.01
  %v846 = vmul.f32 %v836, 0.01
  %v847 = vsel %vm839, %v825, %v843
  %v848 = vsel %vm840, %v828, %v844
  %v849 = vsel %vm841, %v833, %v845
  %v850 = vsel %vm842, %v836, %v846
  %s851 = scalar_lea.vmem %s4, 96
  %v852 = vld [vmem:[%s851] sm:$0xf]
  %v853 = vld [vmem:[%s851 + $0x4] sm:$0xf]
  %v854 = vld [vmem:[%s851 + $0x8] sm:$0xf]
  %v855 = vld [vmem:[%s851 + $0xc] sm:$0xf]
  %v856 = vpack.c.bf16 %v848, %v847
  %v857 = vpack.c.bf16 %v850, %v849
  %s858 = scalar_lea.vmem %s5, 192
  %v859 = vld [vmem:[%s858] sm:$0xff]
  %v860 = vld [vmem:[%s858 + $0x8] sm:$0xff]
  %v861 = vld [vmem:[%s858 + $0x10] sm:$0xff]
  %v862 = vld [vmem:[%s858 + $0x18] sm:$0xff]
  %864 = vset.pattern.permute.xlu0 0
  %865 = vperm.xlu0 %864, %v859
  %v866 = vpop.permute.xlu0 %865
  %869 = vset.pattern.permute.xlu0 0
  %870 = vperm.xlu0 %869, %v860
  %v871 = vpop.permute.xlu0 %870
  %874 = vset.pattern.permute.xlu0 0
  %875 = vperm.xlu0 %874, %v861
  %v876 = vpop.permute.xlu0 %875
  %879 = vset.pattern.permute.xlu0 0
  %880 = vperm.xlu0 %879, %v862
  %v881 = vpop.permute.xlu0 %880
  %v887 = vunpack.c.l.b16 %v852
  %v888 = vunpack.c.l.b16 %v853
  %v889 = vunpack.c.l.b16 %v854
  %v890 = vunpack.c.l.b16 %v855
  %v891 = vpack.c.b16 %v888, %v887
  %v892 = vpack.c.b16 %v890, %v889
  %v894 = vsel %vm143, %v891, 0
  %v897 = vsel %vm143, %v892, 0
  %899 = vmatprep.subr.bf16.mxu0 0
  %900 = vmatpush1.bf16.msra.mxu0 0
  %901 = vmatprep.subr.bf16.mxu0 0
  %902 = vmatpush1.bf16.msra.mxu0 0
  %903 = vmatprep.subr.bf16.mxu0 0
  %904 = vmatpush1.bf16.msra.mxu0 0
  %905 = vmatprep.subr.bf16.mxu0 0
  %906 = vmatpush1.bf16.msra.mxu0 0
  %907 = vmatprep.subr.bf16.mxu0 0
  %908 = vmatpush1.bf16.msra.mxu0 0
  %909 = vmatprep.subr.bf16.mxu0 0
  %910 = vmatpush1.bf16.msra.mxu0 0
  %911 = vmatprep.subr.bf16.mxu0 0
  %912 = vmatpush1.bf16.msra.mxu0 %v857
  %913 = vmatprep.subr.bf16.mxu0 0
  %914 = vmatpush1.bf16.msra.mxu0 %v856
  %915 = vmatprep.subr.bf16.mxu0 0
  %916 = vmatpush2.bf16.msra.mxu0 0
  %917 = vmatprep.subr.bf16.mxu0 0
  %918 = vmatpush2.bf16.msra.mxu0 0
  %919 = vmatprep.subr.bf16.mxu0 0
  %920 = vmatpush2.bf16.msra.mxu0 0
  %921 = vmatprep.subr.bf16.mxu0 0
  %922 = vmatpush2.bf16.msra.mxu0 0
  %923 = vmatprep.subr.bf16.mxu0 0
  %924 = vmatpush2.bf16.msra.mxu0 0
  %925 = vmatprep.subr.bf16.mxu0 0
  %926 = vmatpush2.bf16.msra.mxu0 0
  %927 = vmatprep.subr.bf16.mxu0 0
  %928 = vmatpush2.bf16.msra.mxu0 0
  %929 = vmatprep.subr.bf16.mxu0 0
  %930 = vmatpush2.bf16.msra.mxu0 0
  %931 = vmatprep.mubr.bf16.mxu0 0
  %932 = vmatmul.mubr.bf16.gmra.mxu0 %v894
  %v933 = vpop.f32.mrf.mxu0
  %v934 = vadd.f32 %v866, %v933
  %v935 = vpop.f32.mrf.mxu0
  %v936 = vpop.f32.mrf.mxu0
  %v937 = vadd.f32 %v871, %v936
  %v938 = vpop.f32.mrf.mxu0
  %939 = vmatprep.mubr.bf16.mxu0 0
  %940 = vmatmul.mubr.bf16.gmra.mxu0 %v897
  %v941 = vpop.f32.mrf.mxu0
  %v942 = vadd.f32 %v876, %v941
  %v943 = vpop.f32.mrf.mxu0
  %v944 = vpop.f32.mrf.mxu0
  %v945 = vadd.f32 %v881, %v944
  %v946 = vpop.f32.mrf.mxu0
  %947 = vdwg.mxu0
  %vm948 = vcmp.gt.f32.partialorder %v934, 0.0
  %vm949 = vcmp.gt.f32.partialorder %v937, 0.0
  %vm950 = vcmp.gt.f32.partialorder %v942, 0.0
  %vm951 = vcmp.gt.f32.partialorder %v945, 0.0
  %v952 = vmul.f32 %v934, 0.01
  %v953 = vmul.f32 %v937, 0.01
  %v954 = vmul.f32 %v942, 0.01
  %v955 = vmul.f32 %v945, 0.01
  %v956 = vsel %vm948, %v934, %v952
  %v957 = vsel %vm949, %v937, %v953
  %v958 = vsel %vm950, %v942, %v954
  %v959 = vsel %vm951, %v945, %v955
  %v960 = vld [vmem:[%s6] sm:$0xf]
  %v961 = vpack.c.bf16 %v957, %v956
  %v962 = vpack.c.bf16 %v959, %v958
  %v963 = vld [vmem:[%s7] sm:$0xff]
  %965 = vset.pattern.permute.xlu0 0
  %966 = vperm.xlu0 %965, %v963
  %v967 = vpop.permute.xlu0 %966
  %v970 = vsel %vm143, %v960, 0
  %972 = vmatprep.subr.bf16.mxu0 0
  %973 = vmatpush1.bf16.msra.mxu0 0
  %974 = vmatprep.subr.bf16.mxu0 0
  %975 = vmatpush1.bf16.msra.mxu0 0
  %976 = vmatprep.subr.bf16.mxu0 0
  %977 = vmatpush1.bf16.msra.mxu0 0
  %978 = vmatprep.subr.bf16.mxu0 0
  %979 = vmatpush1.bf16.msra.mxu0 0
  %980 = vmatprep.subr.bf16.mxu0 0
  %981 = vmatpush1.bf16.msra.mxu0 0
  %982 = vmatprep.subr.bf16.mxu0 0
  %983 = vmatpush1.bf16.msra.mxu0 0
  %984 = vmatprep.subr.bf16.mxu0 0
  %985 = vmatpush1.bf16.msra.mxu0 %v962
  %986 = vmatprep.subr.bf16.mxu0 0
  %987 = vmatpush1.bf16.msra.mxu0 %v961
  %988 = vmatprep.subr.bf16.mxu0 0
  %989 = vmatpush2.bf16.msra.mxu0 0
  %990 = vmatprep.subr.bf16.mxu0 0
  %991 = vmatpush2.bf16.msra.mxu0 0
  %992 = vmatprep.subr.bf16.mxu0 0
  %993 = vmatpush2.bf16.msra.mxu0 0
  %994 = vmatprep.subr.bf16.mxu0 0
  %995 = vmatpush2.bf16.msra.mxu0 0
  %996 = vmatprep.subr.bf16.mxu0 0
  %997 = vmatpush2.bf16.msra.mxu0 0
  %998 = vmatprep.subr.bf16.mxu0 0
  %999 = vmatpush2.bf16.msra.mxu0 0
  %1000 = vmatprep.subr.bf16.mxu0 0
  %1001 = vmatpush2.bf16.msra.mxu0 0
  %1002 = vmatprep.subr.bf16.mxu0 0
  %1003 = vmatpush2.bf16.msra.mxu0 0
  %1004 = vmatprep.mubr.bf16.mxu0 0
  %1005 = vmatmul.mubr.bf16.gmra.mxu0 %v970
  %v1006 = vpop.f32.mrf.mxu0
  %v1007 = vadd.f32 %v967, %v1006
  %v1008 = vpop.f32.mrf.mxu0
  %v1009 = vpop.f32.mrf.mxu0
  %v1010 = vpop.f32.mrf.mxu0
  %1011 = vdwg.mxu0
  %v1012 = vmul.f32 %v1007, 0.5
  %v1013 = vmul.f32 %v1007, 0.33333334
  %v1014 = vadd.f32 %v1013, 1.0
  %v1015 = vmul.f32 %v1012, %v1014
  %v1016 = vadd.f32 %v1015, 1.0
  %v1017 = vmul.f32 %v1007, %v1016
  %v1018 = vand.u32 2147483647, %v1007
  %vm1019 = vcmp.lt.f32.partialorder %v1018, 0.01
  %v1020 = vmul.f32 %v1007, 1.442695
  %v1021 = vpow.pop %v1020
  %v1022 = vsub.f32 %v1021, 1.0
  %v1023 = vsel %vm1019, %v1017, %v1022
  %vm1024 = vcmp.gt.f32.partialorder %v1007, 0.0
  %v1025 = vsel %vm1024, %v1007, %v1023
  %1026 = vst [vmem:[%s8] sm:$0xff] %v1025
  // Predicated region
  $region34: #{cgenerator_forward.1} parent=0 // pred_check
    _
  $region35: #{cgenerator_forward.1} parent=0 // pred_check_branch
    %1028 = sbr.rel (0) target = $region37
  $region36: #{cgenerator_forward.1} parent=0 // pred_region
    _
  $region37: #{cgenerator_forward.1} parent=0 // pred_fallthru
    _
  // Predicated region
  $region38: #{cgenerator_forward.1} parent=0 // pred_check
    _
  $region39: #{cgenerator_forward.1} parent=0 // pred_check_branch
    %1030 = sbr.rel (0) target = $region41
  $region40: #{cgenerator_forward.1} parent=0 // pred_region
    _
  $region41: #{cgenerator_forward.1} parent=0 // pred_fallthru
    _

</llo_original>
